<compile_context>
chip_gen: v7x
topology: tpu7x:2x2x1
jax: 0.10.0
libtpu: 0.0.40
codegen_flags: <defaults>
</compile_context>

<pallas_src>
import functools

import jax
import jax.numpy as jnp
from jax.experimental import pallas as pl
from jax.experimental.pallas import tpu as pltpu

EPS = 1e-5


def resblk_kernel(x_ref, mask_ref,
                  w1_ref, g1_ref, be1_ref,
                  w2_ref, g2_ref, be2_ref,
                  o_ref, *, W):
    Cp, P = x_ref.shape
    inv_p = 1.0 / float(P)

    def conv3x3(slab, w_ref):
        # 9 lane-rolled, edge-masked taps of the register-resident (Cp, P)
        # slab, concatenated along the sublane axis into a (9*Cp, P) im2col
        # slab, then ONE MXU matmul with the pixel axis on the lane dim.
        # The precomputed masks zero every wrapped / out-of-image lane
        # (including cross-image bleed through the flattened N*H*W axis).
        taps = []
        for t in range(9):
            oy, ox = t // 3 - 1, t % 3 - 1
            off = oy * W + ox
            if off == 0:
                taps.append(slab)                      # center tap: mask == 1
            else:
                rolled = pltpu.roll(slab, shift=(-off) % P, axis=1)
                taps.append(rolled * mask_ref[t])      # (Cp,P) * (1,P)
        col = jnp.concatenate(taps, axis=0)            # (9*Cp, P), in regs
        return jnp.dot(w_ref[...], col,
                       preferred_element_type=jnp.float32)       # (Cp, P)

    def bn(y, g_ref, be_ref, relu):
        # One-pass train-mode batch stats (biased variance): single XLU
        # lane-reduce over the sublane-stacked [y; y*y] slab.
        stats = jnp.sum(jnp.concatenate([y, y * y], axis=0),
                        axis=1, keepdims=True) * inv_p           # (2*Cp, 1)
        mean, msq = stats[:Cp], stats[Cp:]
        var = jnp.maximum(msq - mean * mean, 0.0)
        scale = jax.lax.rsqrt(var + EPS) * g_ref[...]            # (Cp, 1)
        shift = be_ref[...] - mean * scale                       # (Cp, 1)
        z = y * scale + shift
        return jnp.maximum(z, 0.0) if relu else z

    # conv1 -> bn1 -> relu, conv2 -> bn2, residual add, lane-dense store.
    h1 = bn(conv3x3(x_ref[...], w1_ref), g1_ref, be1_ref, relu=True)
    y2 = bn(conv3x3(h1, w2_ref), g2_ref, be2_ref, relu=False)
    o_ref[...] = (y2 + x_ref[...]).astype(o_ref.dtype)


def resblk_forward(x_nchw, params):
    """x_nchw: (N, C, H, W) float32. Returns (N, C, H, W) float32."""
    # Conv biases b1/b2 are intentionally unused: a per-channel bias added
    # before train-mode BatchNorm cancels exactly in the normalized output.
    w1, _b1, g1, be1, w2, _b2, g2, be2 = params
    N, C, H, W = x_nchw.shape
    P = N * H * W
    Cp = ((C + 7) // 8) * 8                     # pad channels to 8 sublanes

    # Lane-dense (Cp, N*H*W) activation slab; extra channel rows are zero.
    x2d = jnp.transpose(x_nchw, (1, 0, 2, 3)).reshape(C, P).astype(jnp.float32)
    x2d = jnp.pad(x2d, ((0, Cp - C), (0, 0)))

    # Nine SAME-padding edge masks, computed once, pixel-only (9, 1, P).
    pix = jnp.arange(P, dtype=jnp.int32)
    hh = (pix // W) % H
    ww = pix % W
    masks = []
    for dy in range(3):
        for dx in range(3):
            oy, ox = dy - 1, dx - 1
            m = ((hh + oy >= 0) & (hh + oy < H) &
                 (ww + ox >= 0) & (ww + ox < W))
            masks.append(m.astype(jnp.float32))
    mask9 = jnp.stack(masks, axis=0).reshape(9, 1, P)

    def pack_w(w):
        # HWIO (3,3,Cin,Cout) -> (Cp, 9*Cp); k index = t*Cp + ci with
        # t = dy*3 + dx, matching the in-kernel tap concatenation order.
        w9 = jnp.pad(w.reshape(9, C, C).astype(jnp.float32),
                     ((0, 0), (0, Cp - C), (0, Cp - C)))
        return jnp.transpose(w9.reshape(9 * Cp, Cp))

    def pack_c(v):
        # (C,) -> (Cp, 1), zero-padded (padded channels normalize to 0).
        return jnp.pad(v.astype(jnp.float32).reshape(C, 1),
                       ((0, Cp - C), (0, 0)))

    vmem = pl.BlockSpec(memory_space=pltpu.MemorySpace.VMEM)
    out2d = pl.pallas_call(
        functools.partial(resblk_kernel, W=W),
        out_shape=jax.ShapeDtypeStruct((Cp, P), jnp.float32),
        in_specs=[vmem] * 8,
        out_specs=vmem,
        compiler_params=pltpu.CompilerParams(
            vmem_limit_bytes=32 * 1024 * 1024),
    )(x2d, mask9,
      pack_w(w1), pack_c(g1), pack_c(be1),
      pack_w(w2), pack_c(g2), pack_c(be2))

    # (Cp, N*H*W) -> strip channel pad -> (N, C, H, W) in the wrapper.
    return jnp.transpose(out2d[:C].reshape(C, N, H, W), (1, 0, 2, 3))


def ref_forward(x_nchw, params):
    """Pure-JAX reference mirroring PyTorch ResBlk forward (train-mode BN)."""
    w1, b1, g1, be1, w2, b2, g2, be2 = params
    x = jnp.transpose(x_nchw, (0, 2, 3, 1)).astype(jnp.float32)

    def conv(h, w, b):
        y = jax.lax.conv_general_dilated(
            h, w, window_strides=(1, 1), padding='SAME',
            dimension_numbers=('NHWC', 'HWIO', 'NHWC'))
        return y + b.reshape(1, 1, 1, -1)

    def bn(y, g, be):
        m = jnp.mean(y, axis=(0, 1, 2), keepdims=True)
        v = jnp.var(y, axis=(0, 1, 2), keepdims=True)             # biased
        return (y - m) / jnp.sqrt(v + EPS) * g.reshape(1, 1, 1, -1) \
               + be.reshape(1, 1, 1, -1)

    h = jax.nn.relu(bn(conv(x, w1, b1), g1, be1))
    out = bn(conv(h, w2, b2), g2, be2) + x
    return jnp.transpose(out, (0, 3, 1, 2))


def init_params(key, c_in, c_out):
    ks = jax.random.split(key, 8)
    w1 = 0.1 * jax.random.normal(ks[0], (3, 3, c_in, c_out), jnp.float32)
    b1 = 0.1 * jax.random.normal(ks[1], (c_out,), jnp.float32)
    g1 = 1.0 + 0.1 * jax.random.normal(ks[2], (c_out,), jnp.float32)
    be1 = 0.1 * jax.random.normal(ks[3], (c_out,), jnp.float32)
    w2 = 0.1 * jax.random.normal(ks[4], (3, 3, c_out, c_out), jnp.float32)
    b2 = 0.1 * jax.random.normal(ks[5], (c_out,), jnp.float32)
    g2 = 1.0 + 0.1 * jax.random.normal(ks[6], (c_out,), jnp.float32)
    be2 = 0.1 * jax.random.normal(ks[7], (c_out,), jnp.float32)
    return (w1, b1, g1, be1, w2, b2, g2, be2)


if __name__ == "__main__":
    key = jax.random.PRNGKey(0)
    k_param, k_x = jax.random.split(key)

    N, C, H, W = 2, 4, 16, 16          # ResBlk residual requires n_in == n_out
    params = init_params(k_param, C, C)
    x = jax.random.normal(k_x, (N, C, H, W), jnp.float32)

    out = resblk_forward(x, params)
    out = jax.block_until_ready(out)

    ref = jax.block_until_ready(ref_forward(x, params))
    assert out.shape == (N, C, H, W)
    assert jnp.allclose(out, ref, rtol=1e-2, atol=1e-2), \
        f"max abs err {jnp.max(jnp.abs(out - ref))}"

    print("KERNEL_OK")
</pallas_src>

<mosaic_0001>
module attributes {stable_mosaic.version = 11 : i64} {
  func.func @resblk_kernel(%arg0: memref<8x512xf32, #tpu.memory_space<vmem>>, %arg1: memref<9x1x512xf32, #tpu.memory_space<vmem>>, %arg2: memref<8x72xf32, #tpu.memory_space<vmem>>, %arg3: memref<8x1xf32, #tpu.memory_space<vmem>>, %arg4: memref<8x1xf32, #tpu.memory_space<vmem>>, %arg5: memref<8x72xf32, #tpu.memory_space<vmem>>, %arg6: memref<8x1xf32, #tpu.memory_space<vmem>>, %arg7: memref<8x1xf32, #tpu.memory_space<vmem>>, %arg8: memref<8x512xf32, #tpu.memory_space<vmem>>) attributes {dimension_semantics = [], scalar_prefetch = 0 : i64, scratch_operands = 0 : i64, tpu.core_type = #tpu.core_type<tc>} {
    %c0 = arith.constant 0 : index
    %c0_0 = arith.constant 0 : index
    %0 = vector.load %arg0[%c0, %c0_0] : memref<8x512xf32, #tpu.memory_space<vmem>>, vector<8x512xf32>
    %c17_i32 = arith.constant 17 : i32
    %1 = tpu.dynamic_rotate %0 by %c17_i32 dim 1 : vector<8x512xf32>, i32 -> vector<8x512xf32>
    %c0_1 = arith.constant 0 : index
    %c0_2 = arith.constant 0 : index
    %c0_3 = arith.constant 0 : index
    %2 = vector.load %arg1[%c0_1, %c0_2, %c0_3] : memref<9x1x512xf32, #tpu.memory_space<vmem>>, vector<1x1x512xf32>
    %3 = vector.shape_cast %2 : vector<1x1x512xf32> to vector<1x512xf32>
    %4 = vector.broadcast %3 : vector<1x512xf32> to vector<8x512xf32>
    %5 = arith.mulf %1, %4 : vector<8x512xf32>
    %c16_i32 = arith.constant 16 : i32
    %6 = tpu.dynamic_rotate %0 by %c16_i32 dim 1 : vector<8x512xf32>, i32 -> vector<8x512xf32>
    %c1 = arith.constant 1 : index
    %c0_4 = arith.constant 0 : index
    %c0_5 = arith.constant 0 : index
    %7 = vector.load %arg1[%c1, %c0_4, %c0_5] : memref<9x1x512xf32, #tpu.memory_space<vmem>>, vector<1x1x512xf32>
    %8 = vector.shape_cast %7 : vector<1x1x512xf32> to vector<1x512xf32>
    %9 = vector.broadcast %8 : vector<1x512xf32> to vector<8x512xf32>
    %10 = arith.mulf %6, %9 : vector<8x512xf32>
    %c15_i32 = arith.constant 15 : i32
    %11 = tpu.dynamic_rotate %0 by %c15_i32 dim 1 : vector<8x512xf32>, i32 -> vector<8x512xf32>
    %c2 = arith.constant 2 : index
    %c0_6 = arith.constant 0 : index
    %c0_7 = arith.constant 0 : index
    %12 = vector.load %arg1[%c2, %c0_6, %c0_7] : memref<9x1x512xf32, #tpu.memory_space<vmem>>, vector<1x1x512xf32>
    %13 = vector.shape_cast %12 : vector<1x1x512xf32> to vector<1x512xf32>
    %14 = vector.broadcast %13 : vector<1x512xf32> to vector<8x512xf32>
    %15 = arith.mulf %11, %14 : vector<8x512xf32>
    %c1_i32 = arith.constant 1 : i32
    %16 = tpu.dynamic_rotate %0 by %c1_i32 dim 1 : vector<8x512xf32>, i32 -> vector<8x512xf32>
    %c3 = arith.constant 3 : index
    %c0_8 = arith.constant 0 : index
    %c0_9 = arith.constant 0 : index
    %17 = vector.load %arg1[%c3, %c0_8, %c0_9] : memref<9x1x512xf32, #tpu.memory_space<vmem>>, vector<1x1x512xf32>
    %18 = vector.shape_cast %17 : vector<1x1x512xf32> to vector<1x512xf32>
    %19 = vector.broadcast %18 : vector<1x512xf32> to vector<8x512xf32>
    %20 = arith.mulf %16, %19 : vector<8x512xf32>
    %c511_i32 = arith.constant 511 : i32
    %21 = tpu.dynamic_rotate %0 by %c511_i32 dim 1 : vector<8x512xf32>, i32 -> vector<8x512xf32>
    %c5 = arith.constant 5 : index
    %c0_10 = arith.constant 0 : index
    %c0_11 = arith.constant 0 : index
    %22 = vector.load %arg1[%c5, %c0_10, %c0_11] : memref<9x1x512xf32, #tpu.memory_space<vmem>>, vector<1x1x512xf32>
    %23 = vector.shape_cast %22 : vector<1x1x512xf32> to vector<1x512xf32>
    %24 = vector.broadcast %23 : vector<1x512xf32> to vector<8x512xf32>
    %25 = arith.mulf %21, %24 : vector<8x512xf32>
    %c497_i32 = arith.constant 497 : i32
    %26 = tpu.dynamic_rotate %0 by %c497_i32 dim 1 : vector<8x512xf32>, i32 -> vector<8x512xf32>
    %c6 = arith.constant 6 : index
    %c0_12 = arith.constant 0 : index
    %c0_13 = arith.constant 0 : index
    %27 = vector.load %arg1[%c6, %c0_12, %c0_13] : memref<9x1x512xf32, #tpu.memory_space<vmem>>, vector<1x1x512xf32>
    %28 = vector.shape_cast %27 : vector<1x1x512xf32> to vector<1x512xf32>
    %29 = vector.broadcast %28 : vector<1x512xf32> to vector<8x512xf32>
    %30 = arith.mulf %26, %29 : vector<8x512xf32>
    %c496_i32 = arith.constant 496 : i32
    %31 = tpu.dynamic_rotate %0 by %c496_i32 dim 1 : vector<8x512xf32>, i32 -> vector<8x512xf32>
    %c7 = arith.constant 7 : index
    %c0_14 = arith.constant 0 : index
    %c0_15 = arith.constant 0 : index
    %32 = vector.load %arg1[%c7, %c0_14, %c0_15] : memref<9x1x512xf32, #tpu.memory_space<vmem>>, vector<1x1x512xf32>
    %33 = vector.shape_cast %32 : vector<1x1x512xf32> to vector<1x512xf32>
    %34 = vector.broadcast %33 : vector<1x512xf32> to vector<8x512xf32>
    %35 = arith.mulf %31, %34 : vector<8x512xf32>
    %c495_i32 = arith.constant 495 : i32
    %36 = tpu.dynamic_rotate %0 by %c495_i32 dim 1 : vector<8x512xf32>, i32 -> vector<8x512xf32>
    %c8 = arith.constant 8 : index
    %c0_16 = arith.constant 0 : index
    %c0_17 = arith.constant 0 : index
    %37 = vector.load %arg1[%c8, %c0_16, %c0_17] : memref<9x1x512xf32, #tpu.memory_space<vmem>>, vector<1x1x512xf32>
    %38 = vector.shape_cast %37 : vector<1x1x512xf32> to vector<1x512xf32>
    %39 = vector.broadcast %38 : vector<1x512xf32> to vector<8x512xf32>
    %40 = arith.mulf %36, %39 : vector<8x512xf32>
    %41 = tpu.concatenate %5, %10, %15, %20, %0, %25, %30, %35, %40 in 0 : vector<8x512xf32>, vector<8x512xf32>, vector<8x512xf32>, vector<8x512xf32>, vector<8x512xf32>, vector<8x512xf32>, vector<8x512xf32>, vector<8x512xf32>, vector<8x512xf32> -> vector<72x512xf32>
    %c0_18 = arith.constant 0 : index
    %c0_19 = arith.constant 0 : index
    %42 = vector.load %arg2[%c0_18, %c0_19] : memref<8x72xf32, #tpu.memory_space<vmem>>, vector<8x72xf32>
    %cst = arith.constant dense<0.000000e+00> : vector<8x512xf32>
    %43 = tpu.matmul %42, %41, %cst {dimension_numbers = #tpu.dot_dimension_numbers<[1], [0], [0], [1], [0, 0, 1, 1], [], []>} : vector<8x72xf32>, vector<72x512xf32>, vector<8x512xf32> -> vector<8x512xf32>
    %44 = arith.mulf %43, %43 : vector<8x512xf32>
    %45 = tpu.concatenate %43, %44 in 0 : vector<8x512xf32>, vector<8x512xf32> -> vector<16x512xf32>
    %cst_20 = arith.constant dense<0.000000e+00> : vector<16xf32>
    %46 = vector.multi_reduction <add>, %45, %cst_20 [1] : vector<16x512xf32> to vector<16xf32>
    %47 = vector.shape_cast %46 : vector<16xf32> to vector<16x1xf32>
    %cst_21 = arith.constant 0.001953125 : f32
    %48 = vector.broadcast %cst_21 : f32 to vector<16x1xf32>
    %49 = arith.mulf %47, %48 : vector<16x1xf32>
    %50 = vector.extract_strided_slice %49 {offsets = [0, 0], sizes = [8, 1], strides = [1, 1]} : vector<16x1xf32> to vector<8x1xf32>
    %51 = vector.extract_strided_slice %49 {offsets = [8, 0], sizes = [8, 1], strides = [1, 1]} : vector<16x1xf32> to vector<8x1xf32>
    %52 = arith.mulf %50, %50 : vector<8x1xf32>
    %53 = arith.subf %51, %52 : vector<8x1xf32>
    %cst_22 = arith.constant 0.000000e+00 : f32
    %54 = vector.broadcast %cst_22 : f32 to vector<8x1xf32>
    %55 = arith.maximumf %53, %54 : vector<8x1xf32>
    %cst_23 = arith.constant 9.99999974E-6 : f32
    %56 = vector.broadcast %cst_23 : f32 to vector<8x1xf32>
    %57 = arith.addf %55, %56 : vector<8x1xf32>
    %58 = math.rsqrt %57 : vector<8x1xf32>
    %c0_24 = arith.constant 0 : index
    %c0_25 = arith.constant 0 : index
    %59 = vector.load %arg3[%c0_24, %c0_25] : memref<8x1xf32, #tpu.memory_space<vmem>>, vector<8x1xf32>
    %60 = arith.mulf %58, %59 : vector<8x1xf32>
    %c0_26 = arith.constant 0 : index
    %c0_27 = arith.constant 0 : index
    %61 = vector.load %arg4[%c0_26, %c0_27] : memref<8x1xf32, #tpu.memory_space<vmem>>, vector<8x1xf32>
    %62 = arith.mulf %50, %60 : vector<8x1xf32>
    %63 = arith.subf %61, %62 : vector<8x1xf32>
    %64 = vector.broadcast %60 : vector<8x1xf32> to vector<8x512xf32>
    %65 = arith.mulf %43, %64 : vector<8x512xf32>
    %66 = vector.broadcast %63 : vector<8x1xf32> to vector<8x512xf32>
    %67 = arith.addf %65, %66 : vector<8x512xf32>
    %cst_28 = arith.constant 0.000000e+00 : f32
    %68 = vector.broadcast %cst_28 : f32 to vector<8x512xf32>
    %69 = arith.maximumf %67, %68 : vector<8x512xf32>
    %c17_i32_29 = arith.constant 17 : i32
    %70 = tpu.dynamic_rotate %69 by %c17_i32_29 dim 1 : vector<8x512xf32>, i32 -> vector<8x512xf32>
    %c0_30 = arith.constant 0 : index
    %c0_31 = arith.constant 0 : index
    %c0_32 = arith.constant 0 : index
    %71 = vector.load %arg1[%c0_30, %c0_31, %c0_32] : memref<9x1x512xf32, #tpu.memory_space<vmem>>, vector<1x1x512xf32>
    %72 = vector.shape_cast %71 : vector<1x1x512xf32> to vector<1x512xf32>
    %73 = vector.broadcast %72 : vector<1x512xf32> to vector<8x512xf32>
    %74 = arith.mulf %70, %73 : vector<8x512xf32>
    %c16_i32_33 = arith.constant 16 : i32
    %75 = tpu.dynamic_rotate %69 by %c16_i32_33 dim 1 : vector<8x512xf32>, i32 -> vector<8x512xf32>
    %c1_34 = arith.constant 1 : index
    %c0_35 = arith.constant 0 : index
    %c0_36 = arith.constant 0 : index
    %76 = vector.load %arg1[%c1_34, %c0_35, %c0_36] : memref<9x1x512xf32, #tpu.memory_space<vmem>>, vector<1x1x512xf32>
    %77 = vector.shape_cast %76 : vector<1x1x512xf32> to vector<1x512xf32>
    %78 = vector.broadcast %77 : vector<1x512xf32> to vector<8x512xf32>
    %79 = arith.mulf %75, %78 : vector<8x512xf32>
    %c15_i32_37 = arith.constant 15 : i32
    %80 = tpu.dynamic_rotate %69 by %c15_i32_37 dim 1 : vector<8x512xf32>, i32 -> vector<8x512xf32>
    %c2_38 = arith.constant 2 : index
    %c0_39 = arith.constant 0 : index
    %c0_40 = arith.constant 0 : index
    %81 = vector.load %arg1[%c2_38, %c0_39, %c0_40] : memref<9x1x512xf32, #tpu.memory_space<vmem>>, vector<1x1x512xf32>
    %82 = vector.shape_cast %81 : vector<1x1x512xf32> to vector<1x512xf32>
    %83 = vector.broadcast %82 : vector<1x512xf32> to vector<8x512xf32>
    %84 = arith.mulf %80, %83 : vector<8x512xf32>
    %c1_i32_41 = arith.constant 1 : i32
    %85 = tpu.dynamic_rotate %69 by %c1_i32_41 dim 1 : vector<8x512xf32>, i32 -> vector<8x512xf32>
    %c3_42 = arith.constant 3 : index
    %c0_43 = arith.constant 0 : index
    %c0_44 = arith.constant 0 : index
    %86 = vector.load %arg1[%c3_42, %c0_43, %c0_44] : memref<9x1x512xf32, #tpu.memory_space<vmem>>, vector<1x1x512xf32>
    %87 = vector.shape_cast %86 : vector<1x1x512xf32> to vector<1x512xf32>
    %88 = vector.broadcast %87 : vector<1x512xf32> to vector<8x512xf32>
    %89 = arith.mulf %85, %88 : vector<8x512xf32>
    %c511_i32_45 = arith.constant 511 : i32
    %90 = tpu.dynamic_rotate %69 by %c511_i32_45 dim 1 : vector<8x512xf32>, i32 -> vector<8x512xf32>
    %c5_46 = arith.constant 5 : index
    %c0_47 = arith.constant 0 : index
    %c0_48 = arith.constant 0 : index
    %91 = vector.load %arg1[%c5_46, %c0_47, %c0_48] : memref<9x1x512xf32, #tpu.memory_space<vmem>>, vector<1x1x512xf32>
    %92 = vector.shape_cast %91 : vector<1x1x512xf32> to vector<1x512xf32>
    %93 = vector.broadcast %92 : vector<1x512xf32> to vector<8x512xf32>
    %94 = arith.mulf %90, %93 : vector<8x512xf32>
    %c497_i32_49 = arith.constant 497 : i32
    %95 = tpu.dynamic_rotate %69 by %c497_i32_49 dim 1 : vector<8x512xf32>, i32 -> vector<8x512xf32>
    %c6_50 = arith.constant 6 : index
    %c0_51 = arith.constant 0 : index
    %c0_52 = arith.constant 0 : index
    %96 = vector.load %arg1[%c6_50, %c0_51, %c0_52] : memref<9x1x512xf32, #tpu.memory_space<vmem>>, vector<1x1x512xf32>
    %97 = vector.shape_cast %96 : vector<1x1x512xf32> to vector<1x512xf32>
    %98 = vector.broadcast %97 : vector<1x512xf32> to vector<8x512xf32>
    %99 = arith.mulf %95, %98 : vector<8x512xf32>
    %c496_i32_53 = arith.constant 496 : i32
    %100 = tpu.dynamic_rotate %69 by %c496_i32_53 dim 1 : vector<8x512xf32>, i32 -> vector<8x512xf32>
    %c7_54 = arith.constant 7 : index
    %c0_55 = arith.constant 0 : index
    %c0_56 = arith.constant 0 : index
    %101 = vector.load %arg1[%c7_54, %c0_55, %c0_56] : memref<9x1x512xf32, #tpu.memory_space<vmem>>, vector<1x1x512xf32>
    %102 = vector.shape_cast %101 : vector<1x1x512xf32> to vector<1x512xf32>
    %103 = vector.broadcast %102 : vector<1x512xf32> to vector<8x512xf32>
    %104 = arith.mulf %100, %103 : vector<8x512xf32>
    %c495_i32_57 = arith.constant 495 : i32
    %105 = tpu.dynamic_rotate %69 by %c495_i32_57 dim 1 : vector<8x512xf32>, i32 -> vector<8x512xf32>
    %c8_58 = arith.constant 8 : index
    %c0_59 = arith.constant 0 : index
    %c0_60 = arith.constant 0 : index
    %106 = vector.load %arg1[%c8_58, %c0_59, %c0_60] : memref<9x1x512xf32, #tpu.memory_space<vmem>>, vector<1x1x512xf32>
    %107 = vector.shape_cast %106 : vector<1x1x512xf32> to vector<1x512xf32>
    %108 = vector.broadcast %107 : vector<1x512xf32> to vector<8x512xf32>
    %109 = arith.mulf %105, %108 : vector<8x512xf32>
    %110 = tpu.concatenate %74, %79, %84, %89, %69, %94, %99, %104, %109 in 0 : vector<8x512xf32>, vector<8x512xf32>, vector<8x512xf32>, vector<8x512xf32>, vector<8x512xf32>, vector<8x512xf32>, vector<8x512xf32>, vector<8x512xf32>, vector<8x512xf32> -> vector<72x512xf32>
    %c0_61 = arith.constant 0 : index
    %c0_62 = arith.constant 0 : index
    %111 = vector.load %arg5[%c0_61, %c0_62] : memref<8x72xf32, #tpu.memory_space<vmem>>, vector<8x72xf32>
    %cst_63 = arith.constant dense<0.000000e+00> : vector<8x512xf32>
    %112 = tpu.matmul %111, %110, %cst_63 {dimension_numbers = #tpu.dot_dimension_numbers<[1], [0], [0], [1], [0, 0, 1, 1], [], []>} : vector<8x72xf32>, vector<72x512xf32>, vector<8x512xf32> -> vector<8x512xf32>
    %113 = arith.mulf %112, %112 : vector<8x512xf32>
    %114 = tpu.concatenate %112, %113 in 0 : vector<8x512xf32>, vector<8x512xf32> -> vector<16x512xf32>
    %cst_64 = arith.constant dense<0.000000e+00> : vector<16xf32>
    %115 = vector.multi_reduction <add>, %114, %cst_64 [1] : vector<16x512xf32> to vector<16xf32>
    %116 = vector.shape_cast %115 : vector<16xf32> to vector<16x1xf32>
    %cst_65 = arith.constant 0.001953125 : f32
    %117 = vector.broadcast %cst_65 : f32 to vector<16x1xf32>
    %118 = arith.mulf %116, %117 : vector<16x1xf32>
    %119 = vector.extract_strided_slice %118 {offsets = [0, 0], sizes = [8, 1], strides = [1, 1]} : vector<16x1xf32> to vector<8x1xf32>
    %120 = vector.extract_strided_slice %118 {offsets = [8, 0], sizes = [8, 1], strides = [1, 1]} : vector<16x1xf32> to vector<8x1xf32>
    %121 = arith.mulf %119, %119 : vector<8x1xf32>
    %122 = arith.subf %120, %121 : vector<8x1xf32>
    %cst_66 = arith.constant 0.000000e+00 : f32
    %123 = vector.broadcast %cst_66 : f32 to vector<8x1xf32>
    %124 = arith.maximumf %122, %123 : vector<8x1xf32>
    %cst_67 = arith.constant 9.99999974E-6 : f32
    %125 = vector.broadcast %cst_67 : f32 to vector<8x1xf32>
    %126 = arith.addf %124, %125 : vector<8x1xf32>
    %127 = math.rsqrt %126 : vector<8x1xf32>
    %c0_68 = arith.constant 0 : index
    %c0_69 = arith.constant 0 : index
    %128 = vector.load %arg6[%c0_68, %c0_69] : memref<8x1xf32, #tpu.memory_space<vmem>>, vector<8x1xf32>
    %129 = arith.mulf %127, %128 : vector<8x1xf32>
    %c0_70 = arith.constant 0 : index
    %c0_71 = arith.constant 0 : index
    %130 = vector.load %arg7[%c0_70, %c0_71] : memref<8x1xf32, #tpu.memory_space<vmem>>, vector<8x1xf32>
    %131 = arith.mulf %119, %129 : vector<8x1xf32>
    %132 = arith.subf %130, %131 : vector<8x1xf32>
    %133 = vector.broadcast %129 : vector<8x1xf32> to vector<8x512xf32>
    %134 = arith.mulf %112, %133 : vector<8x512xf32>
    %135 = vector.broadcast %132 : vector<8x1xf32> to vector<8x512xf32>
    %136 = arith.addf %134, %135 : vector<8x512xf32>
    %c0_72 = arith.constant 0 : index
    %c0_73 = arith.constant 0 : index
    %137 = vector.load %arg0[%c0_72, %c0_73] : memref<8x512xf32, #tpu.memory_space<vmem>>, vector<8x512xf32>
    %138 = arith.addf %136, %137 : vector<8x512xf32>
    %c0_74 = arith.constant 0 : index
    %c0_75 = arith.constant 0 : index
    %139 = vector.load %arg8[%c0_74, %c0_75] : memref<8x512xf32, #tpu.memory_space<vmem>>, vector<8x512xf32>
    tpu.vector_store %arg8[%c0_74, %c0_75], %138 {strides = array<i32>} : memref<8x512xf32, #tpu.memory_space<vmem>>, vector<8x512xf32>,
    return
  }
}

</mosaic_0001>

<llo_original>
// kernel: tpu_custom_call.1
$region0: #{tpu_custom_call.1}
  #allocation0 [shape = 'u32[]', space=smem, size = 0x4, offset = 0x4, fixed_abs, tag = 'smem constant byte address 0x4 - core index']
  #allocation1 [shape = 'u32[144,128]{1,0:T(1,128)}', space=vmem, size = 0x12000, scoped, tag = 'internal scratch']
  %s0 = inlined_call_operand.hbm [shape: f32[8,512], index: 0, kind: input, shape index: {}]
  %s1 = inlined_call_operand.vmem [shape: f32[9,1,512], index: 1, kind: input, shape index: {}]
  %s2 = inlined_call_operand.hbm [shape: f32[8,72], index: 2, kind: input, shape index: {}]
  %s3 = inlined_call_operand.vmem [shape: f32[8,1], index: 3, kind: input, shape index: {}]
  %s4 = inlined_call_operand.vmem [shape: f32[8,1], index: 4, kind: input, shape index: {}]
  %s5 = inlined_call_operand.vmem [shape: f32[8,72], index: 5, kind: input, shape index: {}]
  %s6 = inlined_call_operand.vmem [shape: f32[8,1], index: 6, kind: input, shape index: {}]
  %s7 = inlined_call_operand.vmem [shape: f32[8,1], index: 7, kind: input, shape index: {}]
  %s8 = inlined_call_operand.hbm [shape: f32[8,512], index: 8, kind: output, shape index: {}]
  %s9 = sld [smem:[#allocation0]]
  $region50: #{tpu_custom_call.1} parent=0
    _
  %s11 = ssub.s32 1, %s9
  %s12 = scalar_select 0, %s11, %s9
  $region1: #{tpu_custom_call.1} parent=0
    #allocation2 [shape = 'u8[16384]{0}', space=vmem, size = 0x4000, scoped, tag = 'input window, operand 0, single buffered']
    #allocation3 [shape = 's32[1]{0}', space=sflag, size = 0x4, scoped, tag = 'scoped memory for tpu_custom_call.1']
    #allocation4 [shape = 's32[1]{0}', space=sflag, size = 0x4, scoped, tag = 'scoped memory for tpu_custom_call.1']
    #allocation5 [shape = 'u8[4096]{0}', space=vmem, size = 0x1000, scoped, tag = 'input window, operand 2, single buffered']
    #allocation6 [shape = 's32[1]{0}', space=sflag, size = 0x4, scoped, tag = 'scoped memory for tpu_custom_call.1']
    #allocation7 [shape = 'u8[16384]{0}', space=vmem, size = 0x4000, scoped, tag = 'output window, operand 0, single buffered']
    %13 = vsyncpa [#allocation3], 0
    %14 = vsyncpa [#allocation6], 0
    %15 = vsyncpa [#allocation4], 0
    // Predicated region
    $region2: #{tpu_custom_call.1} parent=1 // pred_check
      _
    $region3: #{tpu_custom_call.1} parent=1 // pred_check_branch
      %17 = sbr.rel (0) target = $region5
    $region4: #{tpu_custom_call.1} parent=1 // pred_region
      %s19 = ssub.s32 512, 512
      %20 = vsyncadd [#allocation3], %s19
      %s22 = sshll.u32 [#allocation2], 4
      %s23 = int_to_ptr.vmem [resolvable:$true] %s22
      %25 = dma.hbm_to_vmem [thread:$0]  %s0, 512, %s23, [#allocation3]
    $region5: #{tpu_custom_call.1} parent=1 // pred_fallthru
      _
    // Predicated region
    $region6: #{tpu_custom_call.1} parent=1 // pred_check
      _
    $region7: #{tpu_custom_call.1} parent=1 // pred_check_branch
      %27 = sbr.rel (0) target = $region9
    $region8: #{tpu_custom_call.1} parent=1 // pred_region
      _
    $region9: #{tpu_custom_call.1} parent=1 // pred_fallthru
      _
    // Predicated region
    $region10: #{tpu_custom_call.1} parent=1 // pred_check
      _
    $region11: #{tpu_custom_call.1} parent=1 // pred_check_branch
      %29 = sbr.rel (0) target = $region13
    $region12: #{tpu_custom_call.1} parent=1 // pred_region
      %s31 = ssub.s32 128, 128
      %32 = vsyncadd [#allocation6], %s31
      %s34 = sshll.u32 [#allocation5], 4
      %s35 = int_to_ptr.vmem [resolvable:$true] %s34
      %37 = dma.hbm_to_vmem [thread:$0]  %s2, 128, %s35, [#allocation6]
    $region13: #{tpu_custom_call.1} parent=1 // pred_fallthru
      _
    // Predicated region
    $region14: #{tpu_custom_call.1} parent=1 // pred_check
      _
    $region15: #{tpu_custom_call.1} parent=1 // pred_check_branch
      %39 = sbr.rel (0) target = $region17
    $region16: #{tpu_custom_call.1} parent=1 // pred_region
      _
    $region17: #{tpu_custom_call.1} parent=1 // pred_fallthru
      _
    // Predicated region
    $region18: #{tpu_custom_call.1} parent=1 // pred_check
      _
    $region19: #{tpu_custom_call.1} parent=1 // pred_check_branch
      %41 = sbr.rel (0) target = $region21
    $region20: #{tpu_custom_call.1} parent=1 // pred_region
      _
    $region21: #{tpu_custom_call.1} parent=1 // pred_fallthru
      _
    // Predicated region
    $region22: #{tpu_custom_call.1} parent=1 // pred_check
      _
    $region23: #{tpu_custom_call.1} parent=1 // pred_check_branch
      %43 = sbr.rel (0) target = $region25
    $region24: #{tpu_custom_call.1} parent=1 // pred_region
      _
    $region25: #{tpu_custom_call.1} parent=1 // pred_fallthru
      _
    // Predicated region
    $region26: #{tpu_custom_call.1} parent=1 // pred_check
      _
    $region27: #{tpu_custom_call.1} parent=1 // pred_check_branch
      %45 = sbr.rel (0) target = $region29
    $region28: #{tpu_custom_call.1} parent=1 // pred_region
      _
    $region29: #{tpu_custom_call.1} parent=1 // pred_fallthru
      _
    // Predicated region
    $region30: #{tpu_custom_call.1} parent=1 // pred_check
      _
    $region31: #{tpu_custom_call.1} parent=1 // pred_check_branch
      %47 = sbr.rel (0) target = $region33
    $region32: #{tpu_custom_call.1} parent=1 // pred_region
      _
    $region33: #{tpu_custom_call.1} parent=1 // pred_fallthru
      _
    // Predicated region
    $region34: #{tpu_custom_call.1} parent=1 // pred_check
      _
    $region35: #{tpu_custom_call.1} parent=1 // pred_check_branch
      %49 = sbr.rel (0) target = $region37
    $region36: #{tpu_custom_call.1} parent=1 // pred_region
      %50 = dma.done [#allocation3], 512
    $region37: #{tpu_custom_call.1} parent=1 // pred_fallthru
      _
    // Predicated region
    $region38: #{tpu_custom_call.1} parent=1 // pred_check
      _
    $region39: #{tpu_custom_call.1} parent=1 // pred_check_branch
      %52 = sbr.rel (0) target = $region41
    $region40: #{tpu_custom_call.1} parent=1 // pred_region
      %53 = dma.done [#allocation6], 128
    $region41: #{tpu_custom_call.1} parent=1 // pred_fallthru
      _
    %v54 = vld [vmem:[#allocation2] sm:$0xff]
    %v55 = vld [vmem:[#allocation2 + $0x8] sm:$0xff]
    %v56 = vld [vmem:[#allocation2 + $0x10] sm:$0xff]
    %v57 = vld [vmem:[#allocation2 + $0x18] sm:$0xff]
    %58 = vrot.lane.b32.xlu0 %v54, 17
    %v59 = vpop.permute.xlu0 %58
    %60 = vrot.lane.b32.xlu0 %v55, 17
    %v61 = vpop.permute.xlu0 %60
    %62 = vrot.lane.b32.xlu0 %v56, 17
    %v63 = vpop.permute.xlu0 %62
    %64 = vrot.lane.b32.xlu0 %v57, 17
    %v65 = vpop.permute.xlu0 %64
    %v66 = vlaneseq
    %v67 = vand.u32 %v66, 127
    %vm68 = vcmp.lt.s32.totalorder %v67, 17
    %v69 = vsel %vm68, %v63, %v65
    %v70 = vsel %vm68, %v61, %v63
    %v71 = vsel %vm68, %v59, %v61
    %v72 = vsel %vm68, %v65, %v59
    %v73 = vld [vmem:[%s1] sm:$0xf]
    %v75 = vlaneseq
    %v76 = vshrl.u32 %v75, 7
    %v77 = vsub.s32 0, %v76
    %v78 = vrot.slane %v73, %v77
    %v79 = vlaneseq
    %v80 = vshrl.u32 %v79, 7
    %v81 = vsub.s32 1, %v80
    %v82 = vrot.slane %v73, %v81
    %v83 = vlaneseq
    %v84 = vshrl.u32 %v83, 7
    %v85 = vsub.s32 2, %v84
    %v86 = vrot.slane %v73, %v85
    %v87 = vlaneseq
    %v88 = vshrl.u32 %v87, 7
    %v89 = vsub.s32 3, %v88
    %v90 = vrot.slane %v73, %v89
    %v95 = vmul.f32 %v72, %v78
    %v96 = vmul.f32 %v71, %v82
    %v97 = vmul.f32 %v70, %v86
    %v98 = vmul.f32 %v69, %v90
    %99 = vrot.lane.b32.xlu0 %v54, 16
    %v100 = vpop.permute.xlu0 %99
    %101 = vrot.lane.b32.xlu0 %v55, 16
    %v102 = vpop.permute.xlu0 %101
    %103 = vrot.lane.b32.xlu0 %v56, 16
    %v104 = vpop.permute.xlu0 %103
    %105 = vrot.lane.b32.xlu0 %v57, 16
    %v106 = vpop.permute.xlu0 %105
    %vm107 = vcmp.lt.s32.totalorder %v67, 16
    %v108 = vsel %vm107, %v104, %v106
    %v109 = vsel %vm107, %v102, %v104
    %v110 = vsel %vm107, %v100, %v102
    %v111 = vsel %vm107, %v106, %v100
    %s112 = scalar_lea.vmem %s1, 4
    %v113 = vld [vmem:[%s112] sm:$0xf]
    %v115 = vlaneseq
    %v116 = vshrl.u32 %v115, 7
    %v117 = vsub.s32 0, %v116
    %v118 = vrot.slane %v113, %v117
    %v119 = vlaneseq
    %v120 = vshrl.u32 %v119, 7
    %v121 = vsub.s32 1, %v120
    %v122 = vrot.slane %v113, %v121
    %v123 = vlaneseq
    %v124 = vshrl.u32 %v123, 7
    %v125 = vsub.s32 2, %v124
    %v126 = vrot.slane %v113, %v125
    %v127 = vlaneseq
    %v128 = vshrl.u32 %v127, 7
    %v129 = vsub.s32 3, %v128
    %v130 = vrot.slane %v113, %v129
    %v135 = vmul.f32 %v111, %v118
    %v136 = vmul.f32 %v110, %v122
    %v137 = vmul.f32 %v109, %v126
    %v138 = vmul.f32 %v108, %v130
    %139 = vrot.lane.b32.xlu0 %v54, 15
    %v140 = vpop.permute.xlu0 %139
    %141 = vrot.lane.b32.xlu0 %v55, 15
    %v142 = vpop.permute.xlu0 %141
    %143 = vrot.lane.b32.xlu0 %v56, 15
    %v144 = vpop.permute.xlu0 %143
    %145 = vrot.lane.b32.xlu0 %v57, 15
    %v146 = vpop.permute.xlu0 %145
    %vm147 = vcmp.lt.s32.totalorder %v67, 15
    %v148 = vsel %vm147, %v144, %v146
    %v149 = vsel %vm147, %v142, %v144
    %v150 = vsel %vm147, %v140, %v142
    %v151 = vsel %vm147, %v146, %v140
    %s152 = scalar_lea.vmem %s1, 8
    %v153 = vld [vmem:[%s152] sm:$0xf]
    %v155 = vlaneseq
    %v156 = vshrl.u32 %v155, 7
    %v157 = vsub.s32 0, %v156
    %v158 = vrot.slane %v153, %v157
    %v159 = vlaneseq
    %v160 = vshrl.u32 %v159, 7
    %v161 = vsub.s32 1, %v160
    %v162 = vrot.slane %v153, %v161
    %v163 = vlaneseq
    %v164 = vshrl.u32 %v163, 7
    %v165 = vsub.s32 2, %v164
    %v166 = vrot.slane %v153, %v165
    %v167 = vlaneseq
    %v168 = vshrl.u32 %v167, 7
    %v169 = vsub.s32 3, %v168
    %v170 = vrot.slane %v153, %v169
    %v175 = vmul.f32 %v151, %v158
    %v176 = vmul.f32 %v150, %v162
    %v177 = vmul.f32 %v149, %v166
    %v178 = vmul.f32 %v148, %v170
    %179 = vrot.lane.b32.xlu0 %v54, 1
    %v180 = vpop.permute.xlu0 %179
    %181 = vrot.lane.b32.xlu0 %v55, 1
    %v182 = vpop.permute.xlu0 %181
    %183 = vrot.lane.b32.xlu0 %v56, 1
    %v184 = vpop.permute.xlu0 %183
    %185 = vrot.lane.b32.xlu0 %v57, 1
    %v186 = vpop.permute.xlu0 %185
    %vm187 = vcmp.lt.s32.totalorder %v67, 1
    %v188 = vsel %vm187, %v184, %v186
    %v189 = vsel %vm187, %v182, %v184
    %v190 = vsel %vm187, %v180, %v182
    %v191 = vsel %vm187, %v186, %v180
    %s192 = scalar_lea.vmem %s1, 12
    %v193 = vld [vmem:[%s192] sm:$0xf]
    %v195 = vlaneseq
    %v196 = vshrl.u32 %v195, 7
    %v197 = vsub.s32 0, %v196
    %v198 = vrot.slane %v193, %v197
    %v199 = vlaneseq
    %v200 = vshrl.u32 %v199, 7
    %v201 = vsub.s32 1, %v200
    %v202 = vrot.slane %v193, %v201
    %v203 = vlaneseq
    %v204 = vshrl.u32 %v203, 7
    %v205 = vsub.s32 2, %v204
    %v206 = vrot.slane %v193, %v205
    %v207 = vlaneseq
    %v208 = vshrl.u32 %v207, 7
    %v209 = vsub.s32 3, %v208
    %v210 = vrot.slane %v193, %v209
    %v215 = vmul.f32 %v191, %v198
    %v216 = vmul.f32 %v190, %v202
    %v217 = vmul.f32 %v189, %v206
    %v218 = vmul.f32 %v188, %v210
    %219 = vrot.lane.b32.xlu0 %v54, 127
    %v220 = vpop.permute.xlu0 %219
    %221 = vrot.lane.b32.xlu0 %v55, 127
    %v222 = vpop.permute.xlu0 %221
    %223 = vrot.lane.b32.xlu0 %v56, 127
    %v224 = vpop.permute.xlu0 %223
    %225 = vrot.lane.b32.xlu0 %v57, 127
    %v226 = vpop.permute.xlu0 %225
    %vm227 = vcmp.lt.s32.totalorder %v67, 127
    %v228 = vsel %vm227, %v224, %v226
    %v229 = vsel %vm227, %v222, %v224
    %v230 = vsel %vm227, %v220, %v222
    %v231 = vsel %vm227, %v226, %v220
    %s232 = scalar_lea.vmem %s1, 20
    %v233 = vld [vmem:[%s232] sm:$0xf]
    %v235 = vlaneseq
    %v236 = vshrl.u32 %v235, 7
    %v237 = vsub.s32 0, %v236
    %v238 = vrot.slane %v233, %v237
    %v239 = vlaneseq
    %v240 = vshrl.u32 %v239, 7
    %v241 = vsub.s32 1, %v240
    %v242 = vrot.slane %v233, %v241
    %v243 = vlaneseq
    %v244 = vshrl.u32 %v243, 7
    %v245 = vsub.s32 2, %v244
    %v246 = vrot.slane %v233, %v245
    %v247 = vlaneseq
    %v248 = vshrl.u32 %v247, 7
    %v249 = vsub.s32 3, %v248
    %v250 = vrot.slane %v233, %v249
    %v255 = vmul.f32 %v230, %v238
    %v256 = vmul.f32 %v229, %v242
    %v257 = vmul.f32 %v228, %v246
    %v258 = vmul.f32 %v231, %v250
    %259 = vrot.lane.b32.xlu0 %v54, 113
    %v260 = vpop.permute.xlu0 %259
    %261 = vrot.lane.b32.xlu0 %v55, 113
    %v262 = vpop.permute.xlu0 %261
    %263 = vrot.lane.b32.xlu0 %v56, 113
    %v264 = vpop.permute.xlu0 %263
    %265 = vrot.lane.b32.xlu0 %v57, 113
    %v266 = vpop.permute.xlu0 %265
    %vm267 = vcmp.lt.s32.totalorder %v67, 113
    %v268 = vsel %vm267, %v264, %v266
    %v269 = vsel %vm267, %v262, %v264
    %v270 = vsel %vm267, %v260, %v262
    %v271 = vsel %vm267, %v266, %v260
    %s272 = scalar_lea.vmem %s1, 24
    %v273 = vld [vmem:[%s272] sm:$0xf]
    %v275 = vlaneseq
    %v276 = vshrl.u32 %v275, 7
    %v277 = vsub.s32 0, %v276
    %v278 = vrot.slane %v273, %v277
    %v279 = vlaneseq
    %v280 = vshrl.u32 %v279, 7
    %v281 = vsub.s32 1, %v280
    %v282 = vrot.slane %v273, %v281
    %v283 = vlaneseq
    %v284 = vshrl.u32 %v283, 7
    %v285 = vsub.s32 2, %v284
    %v286 = vrot.slane %v273, %v285
    %v287 = vlaneseq
    %v288 = vshrl.u32 %v287, 7
    %v289 = vsub.s32 3, %v288
    %v290 = vrot.slane %v273, %v289
    %v295 = vmul.f32 %v270, %v278
    %v296 = vmul.f32 %v269, %v282
    %v297 = vmul.f32 %v268, %v286
    %v298 = vmul.f32 %v271, %v290
    %299 = vrot.lane.b32.xlu0 %v54, 112
    %v300 = vpop.permute.xlu0 %299
    %301 = vrot.lane.b32.xlu0 %v55, 112
    %v302 = vpop.permute.xlu0 %301
    %303 = vrot.lane.b32.xlu0 %v56, 112
    %v304 = vpop.permute.xlu0 %303
    %305 = vrot.lane.b32.xlu0 %v57, 112
    %v306 = vpop.permute.xlu0 %305
    %vm307 = vcmp.lt.s32.totalorder %v67, 112
    %v308 = vsel %vm307, %v304, %v306
    %v309 = vsel %vm307, %v302, %v304
    %v310 = vsel %vm307, %v300, %v302
    %v311 = vsel %vm307, %v306, %v300
    %s312 = scalar_lea.vmem %s1, 28
    %v313 = vld [vmem:[%s312] sm:$0xf]
    %v315 = vlaneseq
    %v316 = vshrl.u32 %v315, 7
    %v317 = vsub.s32 0, %v316
    %v318 = vrot.slane %v313, %v317
    %v319 = vlaneseq
    %v320 = vshrl.u32 %v319, 7
    %v321 = vsub.s32 1, %v320
    %v322 = vrot.slane %v313, %v321
    %v323 = vlaneseq
    %v324 = vshrl.u32 %v323, 7
    %v325 = vsub.s32 2, %v324
    %v326 = vrot.slane %v313, %v325
    %v327 = vlaneseq
    %v328 = vshrl.u32 %v327, 7
    %v329 = vsub.s32 3, %v328
    %v330 = vrot.slane %v313, %v329
    %v335 = vmul.f32 %v310, %v318
    %v336 = vmul.f32 %v309, %v322
    %v337 = vmul.f32 %v308, %v326
    %v338 = vmul.f32 %v311, %v330
    %339 = vrot.lane.b32.xlu0 %v54, 111
    %v340 = vpop.permute.xlu0 %339
    %341 = vrot.lane.b32.xlu0 %v55, 111
    %v342 = vpop.permute.xlu0 %341
    %343 = vrot.lane.b32.xlu0 %v56, 111
    %v344 = vpop.permute.xlu0 %343
    %345 = vrot.lane.b32.xlu0 %v57, 111
    %v346 = vpop.permute.xlu0 %345
    %vm347 = vcmp.lt.s32.totalorder %v67, 111
    %v348 = vsel %vm347, %v344, %v346
    %v349 = vsel %vm347, %v342, %v344
    %v350 = vsel %vm347, %v340, %v342
    %v351 = vsel %vm347, %v346, %v340
    %s352 = scalar_lea.vmem %s1, 32
    %v353 = vld [vmem:[%s352] sm:$0xf]
    %v355 = vlaneseq
    %v356 = vshrl.u32 %v355, 7
    %v357 = vsub.s32 0, %v356
    %v358 = vrot.slane %v353, %v357
    %v359 = vlaneseq
    %v360 = vshrl.u32 %v359, 7
    %v361 = vsub.s32 1, %v360
    %v362 = vrot.slane %v353, %v361
    %v363 = vlaneseq
    %v364 = vshrl.u32 %v363, 7
    %v365 = vsub.s32 2, %v364
    %v366 = vrot.slane %v353, %v365
    %v367 = vlaneseq
    %v368 = vshrl.u32 %v367, 7
    %v369 = vsub.s32 3, %v368
    %v370 = vrot.slane %v353, %v369
    %v375 = vmul.f32 %v350, %v358
    %v376 = vmul.f32 %v349, %v362
    %v377 = vmul.f32 %v348, %v366
    %v378 = vmul.f32 %v351, %v370
    %v379 = vld [vmem:[#allocation5] sm:$0xff]
    %vm380 = vcmask 588800
    %v382 = vsel %vm380, %v379, 0
    %384 = vmatprep.subr.mxu0 %v96
    %385 = vmatpush1.msra.mxu0 %v95
    %386 = vmatprep.subr.mxu0 %v136
    %387 = vmatpush1.msra.mxu0 %v135
    %388 = vmatprep.subr.mxu0 %v176
    %389 = vmatpush1.msra.mxu0 %v175
    %390 = vmatprep.subr.mxu0 %v216
    %391 = vmatpush1.msra.mxu0 %v215
    %392 = vmatprep.subr.mxu0 %v55
    %393 = vmatpush1.msra.mxu0 %v54
    %394 = vmatprep.subr.mxu0 %v256
    %395 = vmatpush1.msra.mxu0 %v255
    %396 = vmatprep.subr.mxu0 %v296
    %397 = vmatpush1.msra.mxu0 %v295
    %398 = vmatprep.subr.mxu0 %v336
    %399 = vmatpush1.msra.mxu0 %v335
    %400 = vmatprep.subr.mxu0 %v376
    %401 = vmatpush1.msra.mxu0 %v375
    %402 = vmatprep.subr.mxu0 0.0
    %403 = vmatpush1.msra.mxu0 0.0
    %404 = vmatprep.subr.mxu0 0.0
    %405 = vmatpush1.msra.mxu0 0.0
    %406 = vmatprep.subr.mxu0 0.0
    %407 = vmatpush1.msra.mxu0 0.0
    %408 = vmatprep.subr.mxu0 0.0
    %409 = vmatpush1.msra.mxu0 0.0
    %410 = vmatprep.subr.mxu0 0.0
    %411 = vmatpush1.msra.mxu0 0.0
    %412 = vmatprep.subr.mxu0 0.0
    %413 = vmatpush1.msra.mxu0 0.0
    %414 = vmatprep.subr.mxu0 0.0
    %415 = vmatpush1.msra.mxu0 0.0
    %416 = vmatprep.subr.mxu0 0.0
    %417 = vmatpush1.msra.mxu0 0.0
    %418 = vmatprep.subr.mxu0 0.0
    %419 = vmatpush1.msra.mxu0 0.0
    %420 = vmatprep.subr.mxu0 0.0
    %421 = vmatpush1.msra.mxu0 0.0
    %422 = vmatprep.subr.mxu0 0.0
    %423 = vmatpush1.msra.mxu0 0.0
    %424 = vmatprep.subr.mxu0 0.0
    %425 = vmatpush1.msra.mxu0 0.0
    %426 = vmatprep.subr.mxu0 0.0
    %427 = vmatpush1.msra.mxu0 0.0
    %428 = vmatprep.subr.mxu0 0.0
    %429 = vmatpush1.msra.mxu0 0.0
    %430 = vmatprep.subr.mxu0 0.0
    %431 = vmatpush1.msra.mxu0 0.0
    %432 = vmatprep.subr.mxu0 0.0
    %433 = vmatpush1.msra.mxu0 0.0
    %434 = vmatprep.subr.mxu0 0.0
    %435 = vmatpush1.msra.mxu0 0.0
    %436 = vmatprep.subr.mxu0 0.0
    %437 = vmatpush1.msra.mxu0 0.0
    %438 = vmatprep.subr.mxu0 0.0
    %439 = vmatpush1.msra.mxu0 0.0
    %440 = vmatprep.subr.mxu0 0.0
    %441 = vmatpush1.msra.mxu0 0.0
    %442 = vmatprep.subr.mxu0 0.0
    %443 = vmatpush1.msra.mxu0 0.0
    %444 = vmatprep.subr.mxu0 0.0
    %445 = vmatpush1.msra.mxu0 0.0
    %446 = vmatprep.subr.mxu0 0.0
    %447 = vmatpush1.msra.mxu0 0.0
    %448 = vmatprep.mubr.f32.mxu0 0.0
    %449 = vmatmul.mubr.f32.gmra.mrb[0].mxu0 %v382
    %v450 = vpop.f32.mrb[0].mxu0
    %v451 = vadd.f32 0.0, %v450
    %v452 = vpop.f32.mrb[0].mxu0
    %v453 = vadd.f32 0.0, %v452
    %454 = vdwg.mxu0
    %455 = vmatprep.subr.mxu0 %v98
    %456 = vmatpush1.msra.mxu0 %v97
    %457 = vmatprep.subr.mxu0 %v138
    %458 = vmatpush1.msra.mxu0 %v137
    %459 = vmatprep.subr.mxu0 %v178
    %460 = vmatpush1.msra.mxu0 %v177
    %461 = vmatprep.subr.mxu0 %v218
    %462 = vmatpush1.msra.mxu0 %v217
    %463 = vmatprep.subr.mxu0 %v57
    %464 = vmatpush1.msra.mxu0 %v56
    %465 = vmatprep.subr.mxu0 %v258
    %466 = vmatpush1.msra.mxu0 %v257
    %467 = vmatprep.subr.mxu0 %v298
    %468 = vmatpush1.msra.mxu0 %v297
    %469 = vmatprep.subr.mxu0 %v338
    %470 = vmatpush1.msra.mxu0 %v337
    %471 = vmatprep.subr.mxu0 %v378
    %472 = vmatpush1.msra.mxu0 %v377
    %473 = vmatprep.subr.mxu0 0.0
    %474 = vmatpush1.msra.mxu0 0.0
    %475 = vmatprep.subr.mxu0 0.0
    %476 = vmatpush1.msra.mxu0 0.0
    %477 = vmatprep.subr.mxu0 0.0
    %478 = vmatpush1.msra.mxu0 0.0
    %479 = vmatprep.subr.mxu0 0.0
    %480 = vmatpush1.msra.mxu0 0.0
    %481 = vmatprep.subr.mxu0 0.0
    %482 = vmatpush1.msra.mxu0 0.0
    %483 = vmatprep.subr.mxu0 0.0
    %484 = vmatpush1.msra.mxu0 0.0
    %485 = vmatprep.subr.mxu0 0.0
    %486 = vmatpush1.msra.mxu0 0.0
    %487 = vmatprep.subr.mxu0 0.0
    %488 = vmatpush1.msra.mxu0 0.0
    %489 = vmatprep.subr.mxu0 0.0
    %490 = vmatpush1.msra.mxu0 0.0
    %491 = vmatprep.subr.mxu0 0.0
    %492 = vmatpush1.msra.mxu0 0.0
    %493 = vmatprep.subr.mxu0 0.0
    %494 = vmatpush1.msra.mxu0 0.0
    %495 = vmatprep.subr.mxu0 0.0
    %496 = vmatpush1.msra.mxu0 0.0
    %497 = vmatprep.subr.mxu0 0.0
    %498 = vmatpush1.msra.mxu0 0.0
    %499 = vmatprep.subr.mxu0 0.0
    %500 = vmatpush1.msra.mxu0 0.0
    %501 = vmatprep.subr.mxu0 0.0
    %502 = vmatpush1.msra.mxu0 0.0
    %503 = vmatprep.subr.mxu0 0.0
    %504 = vmatpush1.msra.mxu0 0.0
    %505 = vmatprep.subr.mxu0 0.0
    %506 = vmatpush1.msra.mxu0 0.0
    %507 = vmatprep.subr.mxu0 0.0
    %508 = vmatpush1.msra.mxu0 0.0
    %509 = vmatprep.subr.mxu0 0.0
    %510 = vmatpush1.msra.mxu0 0.0
    %511 = vmatprep.subr.mxu0 0.0
    %512 = vmatpush1.msra.mxu0 0.0
    %513 = vmatprep.subr.mxu0 0.0
    %514 = vmatpush1.msra.mxu0 0.0
    %515 = vmatprep.subr.mxu0 0.0
    %516 = vmatpush1.msra.mxu0 0.0
    %517 = vmatprep.subr.mxu0 0.0
    %518 = vmatpush1.msra.mxu0 0.0
    %519 = vmatprep.mubr.f32.mxu0 0.0
    %520 = vmatmul.mubr.f32.gmra.mrb[0].mxu0 %v382
    %v521 = vpop.f32.mrb[0].mxu0
    %v522 = vadd.f32 0.0, %v521
    %v523 = vpop.f32.mrb[0].mxu0
    %v524 = vadd.f32 0.0, %v523
    %525 = vdwg.mxu0
    %v526 = vmul.f32 %v451, %v451
    %v527 = vmul.f32 %v453, %v453
    %v528 = vmul.f32 %v522, %v522
    %v529 = vmul.f32 %v524, %v524
    %v530 = vadd.f32 %v451, %v453
    %v531 = vadd.f32 %v530, %v522
    %v532 = vadd.f32 %v531, %v524
    %533 = vadd.xlane.f32.xlu0 %v532
    %v534 = vpop.xlane.xlu0 %533
    %v535 = vadd.f32 %v526, %v527
    %v536 = vadd.f32 %v535, %v528
    %v537 = vadd.f32 %v536, %v529
    %538 = vadd.xlane.f32.xlu0 %v537
    %v539 = vpop.xlane.xlu0 %538
    %v540 = vmul.f32 %v534, 0.001953125
    %v541 = vmul.f32 %v539, 0.001953125
    %v542 = vmul.f32 %v540, %v540
    %v543 = vsub.f32 %v541, %v542
    %v544 = vmax.f32 %v543, 0.0
    %v545 = vadd.f32 %v544, 1e-05
    %v546 = vrsqrt.pop %v545
    %v547 = vld [vmem:[%s3] sm:$0xff]
    %v548 = vmul.f32 %v546, %v547
    %v549 = vld [vmem:[%s4] sm:$0xff]
    %v550 = vmul.f32 %v540, %v548
    %v551 = vsub.f32 %v549, %v550
    %553 = vset.pattern.permute.xlu0 0
    %554 = vperm.xlu0 %553, %v548
    %v555 = vpop.permute.xlu0 %554
    %v557 = vmul.f32 %v451, %v555
    %v558 = vmul.f32 %v453, %v555
    %v559 = vmul.f32 %v522, %v555
    %v560 = vmul.f32 %v524, %v555
    %562 = vset.pattern.permute.xlu0 0
    %563 = vperm.xlu0 %562, %v551
    %v564 = vpop.permute.xlu0 %563
    %v566 = vadd.f32 %v557, %v564
    %v567 = vadd.f32 %v558, %v564
    %v568 = vadd.f32 %v559, %v564
    %v569 = vadd.f32 %v560, %v564
    %v570 = vmax.f32 %v566, 0.0
    %v571 = vmax.f32 %v567, 0.0
    %v572 = vmax.f32 %v568, 0.0
    %v573 = vmax.f32 %v569, 0.0
    %574 = vrot.lane.b32.xlu0 %v570, 17
    %v575 = vpop.permute.xlu0 %574
    %576 = vrot.lane.b32.xlu0 %v571, 17
    %v577 = vpop.permute.xlu0 %576
    %578 = vrot.lane.b32.xlu0 %v572, 17
    %v579 = vpop.permute.xlu0 %578
    %580 = vrot.lane.b32.xlu0 %v573, 17
    %v581 = vpop.permute.xlu0 %580
    %v582 = vsel %vm68, %v579, %v581
    %v583 = vsel %vm68, %v577, %v579
    %v584 = vsel %vm68, %v575, %v577
    %v585 = vsel %vm68, %v581, %v575
    %v586 = vmul.f32 %v585, %v78
    %v587 = vmul.f32 %v584, %v82
    %v588 = vmul.f32 %v583, %v86
    %v589 = vmul.f32 %v582, %v90
    %590 = vrot.lane.b32.xlu0 %v570, 16
    %v591 = vpop.permute.xlu0 %590
    %592 = vrot.lane.b32.xlu0 %v571, 16
    %v593 = vpop.permute.xlu0 %592
    %594 = vrot.lane.b32.xlu0 %v572, 16
    %v595 = vpop.permute.xlu0 %594
    %596 = vrot.lane.b32.xlu0 %v573, 16
    %v597 = vpop.permute.xlu0 %596
    %v598 = vsel %vm107, %v595, %v597
    %v599 = vsel %vm107, %v593, %v595
    %v600 = vsel %vm107, %v591, %v593
    %v601 = vsel %vm107, %v597, %v591
    %v602 = vmul.f32 %v601, %v118
    %v603 = vmul.f32 %v600, %v122
    %v604 = vmul.f32 %v599, %v126
    %v605 = vmul.f32 %v598, %v130
    %606 = vrot.lane.b32.xlu0 %v570, 15
    %v607 = vpop.permute.xlu0 %606
    %608 = vrot.lane.b32.xlu0 %v571, 15
    %v609 = vpop.permute.xlu0 %608
    %610 = vrot.lane.b32.xlu0 %v572, 15
    %v611 = vpop.permute.xlu0 %610
    %612 = vrot.lane.b32.xlu0 %v573, 15
    %v613 = vpop.permute.xlu0 %612
    %v614 = vsel %vm147, %v611, %v613
    %v615 = vsel %vm147, %v609, %v611
    %v616 = vsel %vm147, %v607, %v609
    %v617 = vsel %vm147, %v613, %v607
    %v618 = vmul.f32 %v617, %v158
    %v619 = vmul.f32 %v616, %v162
    %v620 = vmul.f32 %v615, %v166
    %v621 = vmul.f32 %v614, %v170
    %622 = vrot.lane.b32.xlu0 %v570, 1
    %v623 = vpop.permute.xlu0 %622
    %624 = vrot.lane.b32.xlu0 %v571, 1
    %v625 = vpop.permute.xlu0 %624
    %626 = vrot.lane.b32.xlu0 %v572, 1
    %v627 = vpop.permute.xlu0 %626
    %628 = vrot.lane.b32.xlu0 %v573, 1
    %v629 = vpop.permute.xlu0 %628
    %v630 = vsel %vm187, %v627, %v629
    %v631 = vsel %vm187, %v625, %v627
    %v632 = vsel %vm187, %v623, %v625
    %v633 = vsel %vm187, %v629, %v623
    %v634 = vmul.f32 %v633, %v198
    %v635 = vmul.f32 %v632, %v202
    %v636 = vmul.f32 %v631, %v206
    %v637 = vmul.f32 %v630, %v210
    %638 = vrot.lane.b32.xlu0 %v570, 127
    %v639 = vpop.permute.xlu0 %638
    %640 = vrot.lane.b32.xlu0 %v571, 127
    %v641 = vpop.permute.xlu0 %640
    %642 = vrot.lane.b32.xlu0 %v572, 127
    %v643 = vpop.permute.xlu0 %642
    %644 = vrot.lane.b32.xlu0 %v573, 127
    %v645 = vpop.permute.xlu0 %644
    %v646 = vsel %vm227, %v643, %v645
    %v647 = vsel %vm227, %v641, %v643
    %v648 = vsel %vm227, %v639, %v641
    %v649 = vsel %vm227, %v645, %v639
    %v650 = vmul.f32 %v648, %v238
    %v651 = vmul.f32 %v647, %v242
    %v652 = vmul.f32 %v646, %v246
    %v653 = vmul.f32 %v649, %v250
    %654 = vrot.lane.b32.xlu0 %v570, 113
    %v655 = vpop.permute.xlu0 %654
    %656 = vrot.lane.b32.xlu0 %v571, 113
    %v657 = vpop.permute.xlu0 %656
    %658 = vrot.lane.b32.xlu0 %v572, 113
    %v659 = vpop.permute.xlu0 %658
    %660 = vrot.lane.b32.xlu0 %v573, 113
    %v661 = vpop.permute.xlu0 %660
    %v662 = vsel %vm267, %v659, %v661
    %v663 = vsel %vm267, %v657, %v659
    %v664 = vsel %vm267, %v655, %v657
    %v665 = vsel %vm267, %v661, %v655
    %v666 = vmul.f32 %v664, %v278
    %v667 = vmul.f32 %v663, %v282
    %v668 = vmul.f32 %v662, %v286
    %v669 = vmul.f32 %v665, %v290
    %670 = vrot.lane.b32.xlu0 %v570, 112
    %v671 = vpop.permute.xlu0 %670
    %672 = vrot.lane.b32.xlu0 %v571, 112
    %v673 = vpop.permute.xlu0 %672
    %674 = vrot.lane.b32.xlu0 %v572, 112
    %v675 = vpop.permute.xlu0 %674
    %676 = vrot.lane.b32.xlu0 %v573, 112
    %v677 = vpop.permute.xlu0 %676
    %v678 = vsel %vm307, %v675, %v677
    %v679 = vsel %vm307, %v673, %v675
    %v680 = vsel %vm307, %v671, %v673
    %v681 = vsel %vm307, %v677, %v671
    %v682 = vmul.f32 %v680, %v318
    %v683 = vmul.f32 %v679, %v322
    %v684 = vmul.f32 %v678, %v326
    %v685 = vmul.f32 %v681, %v330
    %686 = vrot.lane.b32.xlu0 %v570, 111
    %v687 = vpop.permute.xlu0 %686
    %688 = vrot.lane.b32.xlu0 %v571, 111
    %v689 = vpop.permute.xlu0 %688
    %690 = vrot.lane.b32.xlu0 %v572, 111
    %v691 = vpop.permute.xlu0 %690
    %692 = vrot.lane.b32.xlu0 %v573, 111
    %v693 = vpop.permute.xlu0 %692
    %v694 = vsel %vm347, %v691, %v693
    %v695 = vsel %vm347, %v689, %v691
    %v696 = vsel %vm347, %v687, %v689
    %v697 = vsel %vm347, %v693, %v687
    %v698 = vmul.f32 %v696, %v358
    %v699 = vmul.f32 %v695, %v362
    %v700 = vmul.f32 %v694, %v366
    %v701 = vmul.f32 %v697, %v370
    %v702 = vld [vmem:[%s5] sm:$0xff]
    %v704 = vsel %vm380, %v702, 0
    %706 = vmatprep.subr.mxu0 %v587
    %707 = vmatpush1.msra.mxu0 %v586
    %708 = vmatprep.subr.mxu0 %v603
    %709 = vmatpush1.msra.mxu0 %v602
    %710 = vmatprep.subr.mxu0 %v619
    %711 = vmatpush1.msra.mxu0 %v618
    %712 = vmatprep.subr.mxu0 %v635
    %713 = vmatpush1.msra.mxu0 %v634
    %714 = vmatprep.subr.mxu0 %v571
    %715 = vmatpush1.msra.mxu0 %v570
    %716 = vmatprep.subr.mxu0 %v651
    %717 = vmatpush1.msra.mxu0 %v650
    %718 = vmatprep.subr.mxu0 %v667
    %719 = vmatpush1.msra.mxu0 %v666
    %720 = vmatprep.subr.mxu0 %v683
    %721 = vmatpush1.msra.mxu0 %v682
    %722 = vmatprep.subr.mxu0 %v699
    %723 = vmatpush1.msra.mxu0 %v698
    %724 = vmatprep.subr.mxu0 0.0
    %725 = vmatpush1.msra.mxu0 0.0
    %726 = vmatprep.subr.mxu0 0.0
    %727 = vmatpush1.msra.mxu0 0.0
    %728 = vmatprep.subr.mxu0 0.0
    %729 = vmatpush1.msra.mxu0 0.0
    %730 = vmatprep.subr.mxu0 0.0
    %731 = vmatpush1.msra.mxu0 0.0
    %732 = vmatprep.subr.mxu0 0.0
    %733 = vmatpush1.msra.mxu0 0.0
    %734 = vmatprep.subr.mxu0 0.0
    %735 = vmatpush1.msra.mxu0 0.0
    %736 = vmatprep.subr.mxu0 0.0
    %737 = vmatpush1.msra.mxu0 0.0
    %738 = vmatprep.subr.mxu0 0.0
    %739 = vmatpush1.msra.mxu0 0.0
    %740 = vmatprep.subr.mxu0 0.0
    %741 = vmatpush1.msra.mxu0 0.0
    %742 = vmatprep.subr.mxu0 0.0
    %743 = vmatpush1.msra.mxu0 0.0
    %744 = vmatprep.subr.mxu0 0.0
    %745 = vmatpush1.msra.mxu0 0.0
    %746 = vmatprep.subr.mxu0 0.0
    %747 = vmatpush1.msra.mxu0 0.0
    %748 = vmatprep.subr.mxu0 0.0
    %749 = vmatpush1.msra.mxu0 0.0
    %750 = vmatprep.subr.mxu0 0.0
    %751 = vmatpush1.msra.mxu0 0.0
    %752 = vmatprep.subr.mxu0 0.0
    %753 = vmatpush1.msra.mxu0 0.0
    %754 = vmatprep.subr.mxu0 0.0
    %755 = vmatpush1.msra.mxu0 0.0
    %756 = vmatprep.subr.mxu0 0.0
    %757 = vmatpush1.msra.mxu0 0.0
    %758 = vmatprep.subr.mxu0 0.0
    %759 = vmatpush1.msra.mxu0 0.0
    %760 = vmatprep.subr.mxu0 0.0
    %761 = vmatpush1.msra.mxu0 0.0
    %762 = vmatprep.subr.mxu0 0.0
    %763 = vmatpush1.msra.mxu0 0.0
    %764 = vmatprep.subr.mxu0 0.0
    %765 = vmatpush1.msra.mxu0 0.0
    %766 = vmatprep.subr.mxu0 0.0
    %767 = vmatpush1.msra.mxu0 0.0
    %768 = vmatprep.subr.mxu0 0.0
    %769 = vmatpush1.msra.mxu0 0.0
    %770 = vmatprep.mubr.f32.mxu0 0.0
    %771 = vmatmul.mubr.f32.gmra.mrb[0].mxu0 %v704
    %v772 = vpop.f32.mrb[0].mxu0
    %v773 = vadd.f32 0.0, %v772
    %v774 = vpop.f32.mrb[0].mxu0
    %v775 = vadd.f32 0.0, %v774
    %776 = vdwg.mxu0
    %777 = vmatprep.subr.mxu0 %v589
    %778 = vmatpush1.msra.mxu0 %v588
    %779 = vmatprep.subr.mxu0 %v605
    %780 = vmatpush1.msra.mxu0 %v604
    %781 = vmatprep.subr.mxu0 %v621
    %782 = vmatpush1.msra.mxu0 %v620
    %783 = vmatprep.subr.mxu0 %v637
    %784 = vmatpush1.msra.mxu0 %v636
    %785 = vmatprep.subr.mxu0 %v573
    %786 = vmatpush1.msra.mxu0 %v572
    %787 = vmatprep.subr.mxu0 %v653
    %788 = vmatpush1.msra.mxu0 %v652
    %789 = vmatprep.subr.mxu0 %v669
    %790 = vmatpush1.msra.mxu0 %v668
    %791 = vmatprep.subr.mxu0 %v685
    %792 = vmatpush1.msra.mxu0 %v684
    %793 = vmatprep.subr.mxu0 %v701
    %794 = vmatpush1.msra.mxu0 %v700
    %795 = vmatprep.subr.mxu0 0.0
    %796 = vmatpush1.msra.mxu0 0.0
    %797 = vmatprep.subr.mxu0 0.0
    %798 = vmatpush1.msra.mxu0 0.0
    %799 = vmatprep.subr.mxu0 0.0
    %800 = vmatpush1.msra.mxu0 0.0
    %801 = vmatprep.subr.mxu0 0.0
    %802 = vmatpush1.msra.mxu0 0.0
    %803 = vmatprep.subr.mxu0 0.0
    %804 = vmatpush1.msra.mxu0 0.0
    %805 = vmatprep.subr.mxu0 0.0
    %806 = vmatpush1.msra.mxu0 0.0
    %807 = vmatprep.subr.mxu0 0.0
    %808 = vmatpush1.msra.mxu0 0.0
    %809 = vmatprep.subr.mxu0 0.0
    %810 = vmatpush1.msra.mxu0 0.0
    %811 = vmatprep.subr.mxu0 0.0
    %812 = vmatpush1.msra.mxu0 0.0
    %813 = vmatprep.subr.mxu0 0.0
    %814 = vmatpush1.msra.mxu0 0.0
    %815 = vmatprep.subr.mxu0 0.0
    %816 = vmatpush1.msra.mxu0 0.0
    %817 = vmatprep.subr.mxu0 0.0
    %818 = vmatpush1.msra.mxu0 0.0
    %819 = vmatprep.subr.mxu0 0.0
    %820 = vmatpush1.msra.mxu0 0.0
    %821 = vmatprep.subr.mxu0 0.0
    %822 = vmatpush1.msra.mxu0 0.0
    %823 = vmatprep.subr.mxu0 0.0
    %824 = vmatpush1.msra.mxu0 0.0
    %825 = vmatprep.subr.mxu0 0.0
    %826 = vmatpush1.msra.mxu0 0.0
    %827 = vmatprep.subr.mxu0 0.0
    %828 = vmatpush1.msra.mxu0 0.0
    %829 = vmatprep.subr.mxu0 0.0
    %830 = vmatpush1.msra.mxu0 0.0
    %831 = vmatprep.subr.mxu0 0.0
    %832 = vmatpush1.msra.mxu0 0.0
    %833 = vmatprep.subr.mxu0 0.0
    %834 = vmatpush1.msra.mxu0 0.0
    %835 = vmatprep.subr.mxu0 0.0
    %836 = vmatpush1.msra.mxu0 0.0
    %837 = vmatprep.subr.mxu0 0.0
    %838 = vmatpush1.msra.mxu0 0.0
    %839 = vmatprep.subr.mxu0 0.0
    %840 = vmatpush1.msra.mxu0 0.0
    %841 = vmatprep.mubr.f32.mxu0 0.0
    %842 = vmatmul.mubr.f32.gmra.mrb[0].mxu0 %v704
    %v843 = vpop.f32.mrb[0].mxu0
    %v844 = vadd.f32 0.0, %v843
    %v845 = vpop.f32.mrb[0].mxu0
    %v846 = vadd.f32 0.0, %v845
    %847 = vdwg.mxu0
    %v848 = vmul.f32 %v773, %v773
    %v849 = vmul.f32 %v775, %v775
    %v850 = vmul.f32 %v844, %v844
    %v851 = vmul.f32 %v846, %v846
    %v852 = vadd.f32 %v773, %v775
    %v853 = vadd.f32 %v852, %v844
    %v854 = vadd.f32 %v853, %v846
    %855 = vadd.xlane.f32.xlu0 %v854
    %v856 = vpop.xlane.xlu0 %855
    %v857 = vadd.f32 %v848, %v849
    %v858 = vadd.f32 %v857, %v850
    %v859 = vadd.f32 %v858, %v851
    %860 = vadd.xlane.f32.xlu0 %v859
    %v861 = vpop.xlane.xlu0 %860
    %v862 = vmul.f32 %v856, 0.001953125
    %v863 = vmul.f32 %v861, 0.001953125
    %v864 = vmul.f32 %v862, %v862
    %v865 = vsub.f32 %v863, %v864
    %v866 = vmax.f32 %v865, 0.0
    %v867 = vadd.f32 %v866, 1e-05
    %v868 = vrsqrt.pop %v867
    %v869 = vld [vmem:[%s6] sm:$0xff]
    %v870 = vmul.f32 %v868, %v869
    %v871 = vld [vmem:[%s7] sm:$0xff]
    %v872 = vmul.f32 %v862, %v870
    %v873 = vsub.f32 %v871, %v872
    %875 = vset.pattern.permute.xlu0 0
    %876 = vperm.xlu0 %875, %v870
    %v877 = vpop.permute.xlu0 %876
    %v879 = vmul.f32 %v773, %v877
    %v880 = vmul.f32 %v775, %v877
    %v881 = vmul.f32 %v844, %v877
    %v882 = vmul.f32 %v846, %v877
    %884 = vset.pattern.permute.xlu0 0
    %885 = vperm.xlu0 %884, %v873
    %v886 = vpop.permute.xlu0 %885
    %v888 = vadd.f32 %v879, %v886
    %v889 = vadd.f32 %v880, %v886
    %v890 = vadd.f32 %v881, %v886
    %v891 = vadd.f32 %v882, %v886
    %v892 = vadd.f32 %v888, %v54
    %v893 = vadd.f32 %v889, %v55
    %v894 = vadd.f32 %v890, %v56
    %v895 = vadd.f32 %v891, %v57
    %896 = vst [vmem:[#allocation7] sm:$0xff] %v892
    %897 = vst [vmem:[#allocation7 + $0x8] sm:$0xff] %v893
    %898 = vst [vmem:[#allocation7 + $0x10] sm:$0xff] %v894
    %899 = vst [vmem:[#allocation7 + $0x18] sm:$0xff] %v895
    // Predicated region
    $region42: #{tpu_custom_call.1} parent=1 // pred_check
      _
    $region43: #{tpu_custom_call.1} parent=1 // pred_check_branch
      %901 = sbr.rel (0) target = $region45
    $region44: #{tpu_custom_call.1} parent=1 // pred_region
      %s903 = ssub.s32 512, 512
      %904 = vsyncadd [#allocation4], %s903
      %s906 = sshll.u32 [#allocation7], 4
      %s907 = int_to_ptr.vmem [resolvable:$true] %s906
      %909 = dma.vmem_to_hbm [thread:$0]  %s907, 512, %s8, [#allocation4]
    $region45: #{tpu_custom_call.1} parent=1 // pred_fallthru
      _
    // Predicated region
    $region46: #{tpu_custom_call.1} parent=1 // pred_check
      _
    $region47: #{tpu_custom_call.1} parent=1 // pred_check_branch
      %911 = sbr.rel (0) target = $region49
    $region48: #{tpu_custom_call.1} parent=1 // pred_region
      %912 = dma.done [#allocation4], 512
    $region49: #{tpu_custom_call.1} parent=1 // pred_fallthru
      _
    %913 = vsyncpa [#allocation3], 1
    %914 = vsyncpa [#allocation6], 1
    %915 = vsyncpa [#allocation4], 1

</llo_original>
